<compile_context>
chip_gen: v7x
topology: tpu7x:2x2x1
jax: 0.10.0
libtpu: 0.0.40
codegen_flags: <defaults>
</compile_context>

<pallas_src>
import functools

import jax
import jax.numpy as jnp
from jax.experimental import pallas as pl
from jax.experimental.pallas import tpu as pltpu


def _ect_points_kernel(nh_ref, lin_ref, batch_ref, out_ref, acc_ref, *,
                       num_graphs, block_steps, block_nodes, matmul_dtype):
    # nh_ref:    (block_nodes, T)        f32, already scaled by 200
    # lin_ref:   (1, block_steps*T)      f32, lin[s] repeated T times, scaled by 200
    # batch_ref: (1, block_nodes)        int32 graph id per node (sentinel G for pad)
    # out_ref:   (G, block_steps*T)      lane-dense output slab
    # acc_ref:   (G, block_steps*T)      f32 accumulator (resident across node tiles)
    n_idx = pl.program_id(1)

    @pl.when(n_idx == 0)
    def _():
        acc_ref[...] = jnp.zeros_like(acc_ref)

    nh = nh_ref[...]                                    # (bn, T)
    lin = lin_ref[...]                                  # (1, bs*T)

    # ecc[n, s*T + t] = sigmoid(200*lin[s] - 200*nh[n, t])  -- lane-dense layout.
    nh_tiled = jnp.tile(nh, (1, block_steps))                    # (bn, bs*T)
    ecc = jax.nn.sigmoid(lin - nh_tiled)                         # (bn, bs*T) f32

    # One-hot graph membership built in-kernel: onehot[g, n] = (batch[n] == g).
    # Padded nodes carry batch id == num_graphs and therefore hit no row.
    bidx = batch_ref[...]                                        # (1, bn) int32
    onehot = (jax.lax.broadcasted_iota(jnp.int32, (num_graphs, block_nodes), 0)
              == bidx).astype(matmul_dtype)                      # (G, bn)

    # Single lane-dense MXU matmul == scatter-add over this node tile.
    acc_ref[...] += jnp.dot(onehot, ecc.astype(matmul_dtype),
                            preferred_element_type=jnp.float32)

    @pl.when(n_idx == pl.num_programs(1) - 1)
    def _():
        out_ref[...] = acc_ref[...].astype(out_ref.dtype)


def _pick_block_steps(S, T):
    # Prefer a lane-dense tile (block_steps*T multiple of 128) that still leaves
    # >=2 tiles on the parallel S axis (feeds both v7x TensorCores).
    for bs in range(S // 2, 0, -1):
        if S % bs == 0 and (bs * T) % 128 == 0:
            return bs
    return S


def ect_layer_points(x, batch, v, lin, num_graphs, *,
                     block_steps=None, block_nodes=None,
                     matmul_dtype=jnp.bfloat16, vmem_limit_bytes=None):
    """Pallas implementation of EctLayer.forward for ect_type='points'.

    Args:
      x:          (N, F) float32 node features.
      batch:      (N,)   int32 graph index per node.
      v:          (F, T) float32 direction parameter.
      lin:        (S,)   float32 linspace(-R, R, bump_steps).
      num_graphs: static int, number of graphs G.
    Returns:
      (G, S, T) float32, matching the PyTorch module's output.
    """
    N, F = x.shape
    T = v.shape[1]
    S = lin.shape[0]

    if block_steps is None:
        block_steps = _pick_block_steps(S, T)
    assert S % block_steps == 0

    if block_nodes is None:
        block_nodes = 256 if N >= 512 else N

    # Pad nodes up to a multiple of the node tile; padded rows get a sentinel batch id
    # (num_graphs) so the in-kernel one-hot drops them -> contribute exactly zero.
    n_pad = pl.cdiv(N, block_nodes) * block_nodes
    # Lane/sublane constraints: a partial node tile must be the full (padded) N or a
    # multiple of 128 (it is the lane dim of the batch slice and the sublane dim of nh).
    assert block_nodes == n_pad or block_nodes % 128 == 0

    # Hoisted precompute (done once, not per grid step) with the 200x scale folded in.
    nh_s = 200.0 * jnp.dot(x.astype(jnp.float32), v.astype(jnp.float32))      # (N, T)
    batch_i32 = batch.astype(jnp.int32)
    if n_pad != N:
        nh_s = jnp.pad(nh_s, ((0, n_pad - N), (0, 0)))
        batch_i32 = jnp.pad(batch_i32, (0, n_pad - N),
                            constant_values=num_graphs)
    lin_flat = jnp.broadcast_to((200.0 * lin.astype(jnp.float32))[:, None],
                                (S, T)).reshape(1, S * T)                     # (1, S*T)
    batch2d = batch_i32.reshape(1, n_pad)                                     # (1, Np)

    kernel = functools.partial(
        _ect_points_kernel,
        num_graphs=num_graphs,
        block_steps=block_steps,
        block_nodes=block_nodes,
        matmul_dtype=matmul_dtype,
    )

    lane = block_steps * T
    out_flat = pl.pallas_call(
        kernel,
        out_shape=jax.ShapeDtypeStruct((num_graphs, S * T), jnp.float32),
        grid_spec=pltpu.PrefetchScalarGridSpec(
            num_scalar_prefetch=0,
            grid=(S // block_steps, n_pad // block_nodes),  # reduction (nodes) last
            in_specs=[
                pl.BlockSpec((block_nodes, T), lambda s, n: (n, 0)),   # nh tile
                pl.BlockSpec((1, lane), lambda s, n: (0, s)),          # lin tile
                pl.BlockSpec((1, block_nodes), lambda s, n: (0, n)),   # batch tile
            ],
            out_specs=pl.BlockSpec((num_graphs, lane), lambda s, n: (0, s)),
            scratch_shapes=[pltpu.VMEM((num_graphs, lane), jnp.float32)],
        ),
        compiler_params=pltpu.CompilerParams(
            dimension_semantics=("parallel", "arbitrary"),
            vmem_limit_bytes=vmem_limit_bytes,
        ),
    )(nh_s, lin_flat, batch2d)

    # Free layout-only reshape back to the PyTorch output shape.
    return out_flat.reshape(num_graphs, S, T)


def _ref_ect_points(x, batch, v, lin, num_graphs):
    """Pure-JAX reference mirroring the PyTorch code."""
    nh = x @ v                                                       # (N, T)
    ecc = jax.nn.sigmoid(200.0 * (lin[:, None, None] - nh[None]))    # (S, N, T)
    out = jnp.zeros((lin.shape[0], num_graphs, v.shape[1]), jnp.float32)
    out = out.at[:, batch, :].add(ecc)                               # index_add dim=1
    return jnp.moveaxis(out, 0, 1)                                   # movedim(0, 1)


if __name__ == "__main__":
    # Config consistent with EctConfig fields:
    #   num_features=4, num_thetas=32, bump_steps=8, R=1.1, fixed=False, ect_type='points'
    N, F, T, S, G = 16, 4, 32, 8, 2
    R = 1.1

    key = jax.random.PRNGKey(0)
    kx, kv = jax.random.split(key)

    x = jax.random.normal(kx, (N, F), dtype=jnp.float32)
    # batch: first half of nodes -> graph 0, second half -> graph 1
    batch = jnp.concatenate(
        [jnp.zeros((N // 2,), jnp.int32), jnp.ones((N - N // 2,), jnp.int32)]
    )
    # Parameter init matching torch.rand(F, T) - 0.5 (deterministic, in-script).
    v = jax.random.uniform(kv, (F, T), dtype=jnp.float32) - 0.5
    lin = jnp.linspace(-R, R, S, dtype=jnp.float32)

    ref = _ref_ect_points(x, batch, v, lin, G)

    # Exact path: f32 matmul operands.
    out_f32 = jax.block_until_ready(
        ect_layer_points(x, batch, v, lin, G, matmul_dtype=jnp.float32)
    )
    assert out_f32.shape == (G, S, T), out_f32.shape
    assert jnp.allclose(out_f32, ref, rtol=1e-4, atol=1e-4), "f32 mismatch vs reference"

    # Fast path (default): bf16 matmul operands, f32 accumulation.
    out_bf16 = jax.block_until_ready(ect_layer_points(x, batch, v, lin, G))
    assert out_bf16.shape == (G, S, T), out_bf16.shape
    assert jnp.allclose(out_bf16, ref, rtol=2e-2, atol=2e-2), "bf16 mismatch vs reference"

    print("KERNEL_OK")
</pallas_src>

<mosaic_0001>
module attributes {stable_mosaic.version = 11 : i64} {
  func.func @_ect_points_kernel(%arg0: i32, %arg1: i32, %arg2: memref<16x32xf32, #tpu.memory_space<vmem>>, %arg3: memref<1x128xf32, #tpu.memory_space<vmem>>, %arg4: memref<1x16xi32, #tpu.memory_space<vmem>>, %arg5: memref<2x128xf32, #tpu.memory_space<vmem>>, %arg6: memref<2x128xf32, #tpu.memory_space<vmem>>) attributes {dimension_semantics = [#tpu.dimension_semantics<parallel>, #tpu.dimension_semantics<arbitrary>], iteration_bounds = array<i64: 2, 1>, scalar_prefetch = 0 : i64, scratch_operands = 1 : i64, tpu.core_type = #tpu.core_type<tc>, window_params = [{transform_indices = @transform_0, window_bounds = array<i64: 16, 32>}, {transform_indices = @transform_1, window_bounds = array<i64: 1, 128>}, {transform_indices = @transform_2, window_bounds = array<i64: 1, 16>}, {transform_indices = @transform_3, window_bounds = array<i64: 2, 128>}]} {
    %c0_i32 = arith.constant 0 : i32
    %0 = arith.cmpi eq, %arg1, %c0_i32 : i32
    %1 = arith.extui %0 : i1 to i32
    %c0_i32_0 = arith.constant 0 : i32
    %2 = arith.cmpi ne, %1, %c0_i32_0 : i32
    scf.if %2 {
      %cst_13 = arith.constant 0.000000e+00 : f32
      %26 = vector.broadcast %cst_13 : f32 to vector<2x128xf32>
      %c0_14 = arith.constant 0 : index
      %c0_15 = arith.constant 0 : index
      %27 = vector.load %arg6[%c0_14, %c0_15] : memref<2x128xf32, #tpu.memory_space<vmem>>, vector<2x128xf32>
      tpu.vector_store %arg6[%c0_14, %c0_15], %26 {strides = array<i32>} : memref<2x128xf32, #tpu.memory_space<vmem>>, vector<2x128xf32>,
    } else {
    }
    %c0 = arith.constant 0 : index
    %c0_1 = arith.constant 0 : index
    %3 = vector.load %arg2[%c0, %c0_1] : memref<16x32xf32, #tpu.memory_space<vmem>>, vector<16x32xf32>
    %c0_2 = arith.constant 0 : index
    %c0_3 = arith.constant 0 : index
    %4 = vector.load %arg3[%c0_2, %c0_3] : memref<1x128xf32, #tpu.memory_space<vmem>>, vector<1x128xf32>
    %5 = tpu.concatenate %3, %3, %3, %3 in 1 : vector<16x32xf32>, vector<16x32xf32>, vector<16x32xf32>, vector<16x32xf32> -> vector<16x128xf32>
    %6 = vector.broadcast %4 : vector<1x128xf32> to vector<16x128xf32>
    %7 = arith.subf %6, %5 : vector<16x128xf32>
    %8 = arith.negf %7 : vector<16x128xf32>
    %9 = math.exp %8 : vector<16x128xf32>
    %cst = arith.constant 1.000000e+00 : f32
    %10 = vector.broadcast %cst : f32 to vector<16x128xf32>
    %11 = arith.addf %10, %9 : vector<16x128xf32>
    %12 = arith.divf %10, %11 : vector<16x128xf32>
    %c0_4 = arith.constant 0 : index
    %c0_5 = arith.constant 0 : index
    %13 = vector.load %arg4[%c0_4, %c0_5] : memref<1x16xi32, #tpu.memory_space<vmem>>, vector<1x16xi32>
    %14 = tpu.iota {dimensions = array<i32: 0>} : vector<2x16xi32>
    %15 = vector.broadcast %13 : vector<1x16xi32> to vector<2x16xi32>
    %16 = arith.cmpi eq, %14, %15 : vector<2x16xi32>
    %17 = arith.extui %16 : vector<2x16xi1> to vector<2x16xi32>
    %18 = arith.sitofp %17 : vector<2x16xi32> to vector<2x16xf32>
    %c0_6 = arith.constant 0 : index
    %c0_7 = arith.constant 0 : index
    %19 = vector.load %arg6[%c0_6, %c0_7] : memref<2x128xf32, #tpu.memory_space<vmem>>, vector<2x128xf32>
    %cst_8 = arith.constant dense<0.000000e+00> : vector<2x128xf32>
    %20 = tpu.matmul %18, %12, %cst_8 {dimension_numbers = #tpu.dot_dimension_numbers<[1], [0], [0], [1], [0, 0, 1, 1], [], []>} : vector<2x16xf32>, vector<16x128xf32>, vector<2x128xf32> -> vector<2x128xf32>
    %21 = arith.addf %19, %20 : vector<2x128xf32>
    %c0_9 = arith.constant 0 : index
    %c0_10 = arith.constant 0 : index
    %22 = vector.load %arg6[%c0_9, %c0_10] : memref<2x128xf32, #tpu.memory_space<vmem>>, vector<2x128xf32>
    tpu.vector_store %arg6[%c0_9, %c0_10], %21 {strides = array<i32>} : memref<2x128xf32, #tpu.memory_space<vmem>>, vector<2x128xf32>,
    %c0_i32_11 = arith.constant 0 : i32
    %23 = arith.cmpi eq, %arg1, %c0_i32_11 : i32
    %24 = arith.extui %23 : i1 to i32
    %c0_i32_12 = arith.constant 0 : i32
    %25 = arith.cmpi ne, %24, %c0_i32_12 : i32
    scf.if %25 {
      %c0_13 = arith.constant 0 : index
      %c0_14 = arith.constant 0 : index
      %26 = vector.load %arg6[%c0_13, %c0_14] : memref<2x128xf32, #tpu.memory_space<vmem>>, vector<2x128xf32>
      %c0_15 = arith.constant 0 : index
      %c0_16 = arith.constant 0 : index
      %27 = vector.load %arg5[%c0_15, %c0_16] : memref<2x128xf32, #tpu.memory_space<vmem>>, vector<2x128xf32>
      tpu.vector_store %arg5[%c0_15, %c0_16], %26 {strides = array<i32>} : memref<2x128xf32, #tpu.memory_space<vmem>>, vector<2x128xf32>,
    } else {
    }
    return
  }
  func.func @transform_0(%arg0: i32, %arg1: i32) -> (i32, i32) {
    %c0_i32 = arith.constant 0 : i32
    %c0_i32_0 = arith.constant 0 : i32
    return %arg1, %c0_i32 : i32, i32
  }
  func.func @transform_1(%arg0: i32, %arg1: i32) -> (i32, i32) {
    %c0_i32 = arith.constant 0 : i32
    %c0_i32_0 = arith.constant 0 : i32
    return %c0_i32, %arg0 : i32, i32
  }
  func.func @transform_2(%arg0: i32, %arg1: i32) -> (i32, i32) {
    %c0_i32 = arith.constant 0 : i32
    %c0_i32_0 = arith.constant 0 : i32
    return %c0_i32, %arg1 : i32, i32
  }
  func.func @transform_3(%arg0: i32, %arg1: i32) -> (i32, i32) {
    %c0_i32 = arith.constant 0 : i32
    %c0_i32_0 = arith.constant 0 : i32
    return %c0_i32, %arg0 : i32, i32
  }
}

</mosaic_0001>

<llo_original>
// kernel: tpu_custom_call.1
$region0: #{tpu_custom_call.1}
  #allocation0 [shape = 'u32[]', space=smem, size = 0x4, offset = 0x4, fixed_abs, tag = 'smem constant byte address 0x4 - core index']
  #allocation1 [shape = 'u32[144,128]{1,0:T(1,128)}', space=vmem, size = 0x12000, scoped, tag = 'internal scratch']
  #allocation2 [shape = 'f32[2,128]{1,0:T(2,128)}', space=vmem, size = 0x400, scoped, tag = 'scratch operand']
  %s0 = inlined_call_operand.hbm [shape: f32[16,32], index: 0, kind: input, shape index: {}]
  %s1 = inlined_call_operand.vmem [shape: f32[1,256], index: 1, kind: input, shape index: {}]
  %s2 = inlined_call_operand.vmem [shape: s32[1,16], index: 2, kind: input, shape index: {}]
  %s3 = inlined_call_operand.hbm [shape: f32[2,256], index: 3, kind: output, shape index: {}]
  %s4 = sld [smem:[#allocation0]]
  $region57: #{tpu_custom_call.1} parent=0
    _
  %s6 = ssub.s32 1, %s4
  %s7 = scalar_select 0, %s6, %s4
  $region1: #{tpu_custom_call.1} parent=0
    #allocation3 [shape = 'u8[8192]{0}', space=vmem, size = 0x2000, scoped, tag = 'input window, operand 0, single buffered']
    #allocation4 [shape = 's32[2]{0}', space=sflag, size = 0x8, scoped, tag = 'scoped memory for tpu_custom_call.1']
    #allocation5 [shape = 's32[2]{0}', space=sflag, size = 0x8, scoped, tag = 'scoped memory for tpu_custom_call.1']
    #allocation6 [shape = 'u8[2048]{0}', space=vmem, size = 0x800, scoped, tag = 'output window, operand 0']
    %8 = vsyncpa [#allocation4], 0
    %9 = vsyncpa [#allocation5], 0
    %s10 = scalar_lea.sflag [#allocation5], 1
    %11 = vsyncpa %s10, 0
    loop: start=0, step=1, limit=4
    $region2: #{tpu_custom_call.1} parent=1 // loop_pre_header
      _
    $region3: #{tpu_custom_call.1} parent=1 // loop_header
      %s13 = sphi 0, %s17
      %p14 = scmp.ge.s32.totalorder %s13, 4
      %s20 = sphi 0, %s32
      %s21 = sphi 0, %s28
      %s22 = sphi 0, %s20
      %s23 = sphi 0, %s21
      %s24 = sphi 0, %s22
      %s25 = sphi 0, %s23
      %s35 = sphi 0, %s37
      %s38 = sphi 0, %s35
      %s39 = sphi 0, %s38
      %s55 = sphi 0, %s39
      %s61 = sphi 0, %s63
      %s64 = sphi 0, %s61
      %s65 = sphi 0, %s64
      %s81 = sphi 0, %s65
      %s87 = sphi 0, %s89
      %s90 = sphi 0, %s87
      %s91 = sphi 0, %s90
      %s107 = sphi 0, %s91
      %s113 = sphi 0, %s115
      %s116 = sphi 0, %s113
      %s117 = sphi 0, %s116
      %s133 = sphi 0, %s117
    $region4: #{tpu_custom_call.1} parent=1 // loop_header_branch
      %16 = sbr.rel (%p14) target = $region8
    $region5: #{tpu_custom_call.1} parent=1 // loop_body
      %s18 = ssub.s32 %s13, 1
      %s19 = ssub.s32 %s13, 2
      %s26 = sadd.s32 1, %s21
      %p27 = scmp.ge.s32.totalorder %s26, 1
      %s28 = scalar_select %p27, 0, %s26
      %s29 = sadd.s32 1, %s20
      %s30 = scalar_select %p27, %s29, %s20
      %p31 = scmp.ge.s32.totalorder %s30, 2
      %s32 = scalar_select %p31, 0, %s30
      %s33 = ssub.s32 %s21, %s28
      %p34 = scmp.eq.s32.totalorder %s33, 0
      %s36 = sadd.s32 %s35, 1
      %s37 = scalar_select %p34, %s35, %s36
      %p40 = pneg %p34
      %p41 = scmp.eq.s32.totalorder %s13, 1
      %p42 = por %p40, %p41
      %p43 = scmp.ne.s32.totalorder %s35, %s38
      %p44 = scmp.eq.s32.totalorder %s13, 0
      %p45 = por %p43, %p44
      %p46 = scmp.ne.s32.totalorder %s35, %s38
      %p47 = scmp.eq.s32.totalorder %s18, 1
      %p48 = por %p46, %p47
      %p49 = scmp.ne.s32.totalorder %s38, %s39
      %p50 = scmp.eq.s32.totalorder %s18, 0
      %p51 = por %p49, %p50
      %p52 = scmp.ne.s32.totalorder %s38, %s39
      %p53 = scmp.eq.s32.totalorder %s19, 1
      %p54 = por %p52, %p53
      %p56 = scmp.ne.s32.totalorder %s39, %s55
      %p57 = scmp.eq.s32.totalorder %s19, 0
      %p58 = por %p56, %p57
      %s59 = ssub.s32 %s20, %s32
      %p60 = scmp.eq.s32.totalorder %s59, 0
      %s62 = sadd.s32 %s61, 1
      %s63 = scalar_select %p60, %s61, %s62
      %p66 = pneg %p60
      %p67 = scmp.eq.s32.totalorder %s13, 1
      %p68 = por %p66, %p67
      %p69 = scmp.ne.s32.totalorder %s61, %s64
      %p70 = scmp.eq.s32.totalorder %s13, 0
      %p71 = por %p69, %p70
      %p72 = scmp.ne.s32.totalorder %s61, %s64
      %p73 = scmp.eq.s32.totalorder %s18, 1
      %p74 = por %p72, %p73
      %p75 = scmp.ne.s32.totalorder %s64, %s65
      %p76 = scmp.eq.s32.totalorder %s18, 0
      %p77 = por %p75, %p76
      %p78 = scmp.ne.s32.totalorder %s64, %s65
      %p79 = scmp.eq.s32.totalorder %s19, 1
      %p80 = por %p78, %p79
      %p82 = scmp.ne.s32.totalorder %s65, %s81
      %p83 = scmp.eq.s32.totalorder %s19, 0
      %p84 = por %p82, %p83
      %s85 = ssub.s32 %s21, %s28
      %p86 = scmp.eq.s32.totalorder %s85, 0
      %s88 = sadd.s32 %s87, 1
      %s89 = scalar_select %p86, %s87, %s88
      %p92 = pneg %p86
      %p93 = scmp.eq.s32.totalorder %s13, 1
      %p94 = por %p92, %p93
      %p95 = scmp.ne.s32.totalorder %s87, %s90
      %p96 = scmp.eq.s32.totalorder %s13, 0
      %p97 = por %p95, %p96
      %p98 = scmp.ne.s32.totalorder %s87, %s90
      %p99 = scmp.eq.s32.totalorder %s18, 1
      %p100 = por %p98, %p99
      %p101 = scmp.ne.s32.totalorder %s90, %s91
      %p102 = scmp.eq.s32.totalorder %s18, 0
      %p103 = por %p101, %p102
      %p104 = scmp.ne.s32.totalorder %s90, %s91
      %p105 = scmp.eq.s32.totalorder %s19, 1
      %p106 = por %p104, %p105
      %p108 = scmp.ne.s32.totalorder %s91, %s107
      %p109 = scmp.eq.s32.totalorder %s19, 0
      %p110 = por %p108, %p109
      %s111 = ssub.s32 %s20, %s32
      %p112 = scmp.eq.s32.totalorder %s111, 0
      %s114 = sadd.s32 %s113, 1
      %s115 = scalar_select %p112, %s113, %s114
      %p118 = pneg %p112
      %p119 = scmp.eq.s32.totalorder %s13, 1
      %p120 = por %p118, %p119
      %p121 = scmp.ne.s32.totalorder %s113, %s116
      %p122 = scmp.eq.s32.totalorder %s13, 0
      %p123 = por %p121, %p122
      %p124 = scmp.ne.s32.totalorder %s113, %s116
      %p125 = scmp.eq.s32.totalorder %s18, 1
      %p126 = por %p124, %p125
      %p127 = scmp.ne.s32.totalorder %s116, %s117
      %p128 = scmp.eq.s32.totalorder %s18, 0
      %p129 = por %p127, %p128
      %p130 = scmp.ne.s32.totalorder %s116, %s117
      %p131 = scmp.eq.s32.totalorder %s19, 1
      %p132 = por %p130, %p131
      %p134 = scmp.ne.s32.totalorder %s117, %s133
      %p135 = scmp.eq.s32.totalorder %s19, 0
      %p136 = por %p134, %p135
      %p137 = scmp.le.s32.totalorder 1, %s13
      %p138 = scmp.lt.s32.totalorder %s13, 3
      %p139 = pnand %p137, %p138
      %p140 = pneg %p139
      // Predicated region
      $region9: #{tpu_custom_call.1} parent=5 // pred_check
        _
      $region10: #{tpu_custom_call.1} parent=5 // pred_check_branch
        %142 = sbr.rel (%p139) target = $region12
      $region11: #{tpu_custom_call.1} parent=5 // pred_region
        %s143 = ssub.s32 %s13, 1
        // Predicated region
        $region13: #{tpu_custom_call.1} parent=11 // pred_check
          %p144 = pneg %p51
        $region14: #{tpu_custom_call.1} parent=11 // pred_check_branch
          %146 = sbr.rel (%p144) target = $region16
        $region15: #{tpu_custom_call.1} parent=11 // pred_region
          %s147 = smul.u32 2, %s23
          %s149 = ssub.s32 256, 256
          %150 = vsyncadd [#allocation4], %s149
          %s151 = smul.addr %s147, 128
          %s152 = scalar_lea.hbm %s0, %s151
          %s153 = sshll.u32 [#allocation3], 4
          %s154 = int_to_ptr.vmem [resolvable:$true] %s153
          %159 = dma.hbm_to_vmem [thread:$0]  %s152, 256, %s154, [#allocation4], 128, 128, 8
        $region16: #{tpu_custom_call.1} parent=11 // pred_fallthru
          _
        // Predicated region
        $region17: #{tpu_custom_call.1} parent=11 // pred_check
          %p160 = pneg %p103
        $region18: #{tpu_custom_call.1} parent=11 // pred_check_branch
          %162 = sbr.rel (%p160) target = $region20
        $region19: #{tpu_custom_call.1} parent=11 // pred_region
          %p163 = scmp.lt.s32.totalorder %s23, 0
          %s164 = scalar_select %p163, %s23, 0
          %s165 = scalar_lea.vmem %s2, %s164
        $region20: #{tpu_custom_call.1} parent=11 // pred_fallthru
          _
      $region12: #{tpu_custom_call.1} parent=5 // pred_fallthru
        _
      %p166 = scmp.lt.s32.totalorder %s13, 2
      // Predicated region
      $region21: #{tpu_custom_call.1} parent=5 // pred_check
        %p167 = pneg %p166
      $region22: #{tpu_custom_call.1} parent=5 // pred_check_branch
        %169 = sbr.rel (%p167) target = $region24
      $region23: #{tpu_custom_call.1} parent=5 // pred_region
        // Predicated region
        $region25: #{tpu_custom_call.1} parent=23 // pred_check
          %p170 = pneg %p71
        $region26: #{tpu_custom_call.1} parent=23 // pred_check_branch
          %172 = sbr.rel (%p170) target = $region28
        $region27: #{tpu_custom_call.1} parent=23 // pred_region
          %p173 = scmp.lt.s32.totalorder %s20, 1
          %s174 = scalar_select %p173, %s20, 1
          %s175 = scalar_lea.vmem %s1, %s174
        $region28: #{tpu_custom_call.1} parent=23 // pred_fallthru
          _
      $region24: #{tpu_custom_call.1} parent=5 // pred_fallthru
        _
      %p176 = scmp.le.s32.totalorder 1, %s13
      %p177 = scmp.lt.s32.totalorder %s13, 3
      %p178 = pnand %p176, %p177
      %p179 = pneg %p178
      // Predicated region
      $region29: #{tpu_custom_call.1} parent=5 // pred_check
        _
      $region30: #{tpu_custom_call.1} parent=5 // pred_check_branch
        %181 = sbr.rel (%p178) target = $region32
      $region31: #{tpu_custom_call.1} parent=5 // pred_region
        %s182 = ssub.s32 %s13, 1
        // Predicated region
        $region33: #{tpu_custom_call.1} parent=31 // pred_check
          %p183 = pneg %p51
        $region34: #{tpu_custom_call.1} parent=31 // pred_check_branch
          %185 = sbr.rel (%p183) target = $region36
        $region35: #{tpu_custom_call.1} parent=31 // pred_region
          %186 = dma.done [#allocation4], 256
        $region36: #{tpu_custom_call.1} parent=31 // pred_fallthru
          _
        %p187 = pneg %p51
        %p188 = pneg %p48
        %p189 = scmp.lt.s32.totalorder %s22, 1
        %s190 = scalar_select %p189, %s22, 1
        %s191 = scalar_lea.vmem %s1, %s190
        %p192 = pneg %p77
        %p193 = pneg %p74
        %p194 = scmp.lt.s32.totalorder %s23, 0
        %s195 = scalar_select %p194, %s23, 0
        %s196 = scalar_lea.vmem %s2, %s195
        %p197 = pneg %p103
        %p198 = pneg %p100
        %p199 = pneg %p129
        %p200 = pneg %p126
        %s201 = sand.u32 %s116, 1
        %s202 = scalar_lea.sflag [#allocation5], %s201
        %s203 = sand.u32 %s116, 1
        %s204 = smul.addr %s203, 2
        %s205 = scalar_lea.vmem [#allocation6], %s204
        %s206 = smul.u32 2, %s23
        %p207 = scmp.lt.s32.totalorder %s22, 1
        %s208 = scalar_select %p207, %s22, 1
        %s209 = scalar_lea.vmem %s1, %s208
        %p210 = scmp.lt.s32.totalorder %s23, 0
        %s211 = scalar_select %p210, %s23, 0
        %s212 = scalar_lea.vmem %s2, %s211
        %p213 = scmp.eq.s32.totalorder %s23, 0
        // Predicated region
        $region37: #{tpu_custom_call.1} parent=31 // pred_check
          %p214 = pneg %p213
        $region38: #{tpu_custom_call.1} parent=31 // pred_check_branch
          %216 = sbr.rel (%p214) target = $region40
        $region39: #{tpu_custom_call.1} parent=31 // pred_region
          %217 = vst [vmem:[#allocation2] sm:$0x3] 0.0
        $region40: #{tpu_custom_call.1} parent=31 // pred_fallthru
          _
        %v218 = vld [vmem:[#allocation3] sm:$0xff]
        %v219 = vld [vmem:[#allocation3 + $0x8] sm:$0xff]
        %v220 = vld [vmem:[%s209] sm:$0x1]
        %223 = vrot.lane.b32.xlu0 %v218, 32
        %v224 = vpop.permute.xlu0 %223
        %225 = vrot.lane.b32.xlu0 %v219, 32
        %v226 = vpop.permute.xlu0 %225
        %229 = vrot.lane.b32.xlu0 %v218, 64
        %v230 = vpop.permute.xlu0 %229
        %231 = vrot.lane.b32.xlu0 %v219, 64
        %v232 = vpop.permute.xlu0 %231
        %235 = vrot.lane.b32.xlu0 %v218, 96
        %v236 = vpop.permute.xlu0 %235
        %237 = vrot.lane.b32.xlu0 %v219, 96
        %v238 = vpop.permute.xlu0 %237
        %vm241 = vcmask 261120
        %v242 = vsel %vm241, %v218, %v224
        %v243 = vsel %vm241, %v219, %v226
        %vm244 = vcmask 523264
        %v245 = vsel %vm244, %v242, %v230
        %v246 = vsel %vm244, %v243, %v232
        %vm247 = vcmask 785408
        %v248 = vsel %vm247, %v245, %v236
        %v249 = vsel %vm247, %v246, %v238
        %v251 = vlaneseq
        %v252 = vshrl.u32 %v251, 7
        %v253 = vsub.s32 0, %v252
        %v254 = vrot.slane %v220, %v253
        %v256 = vsub.f32 %v254, %v248
        %v257 = vsub.f32 %v254, %v249
        %v258 = vxor.u32 %v256, 2147483648
        %v259 = vxor.u32 %v257, 2147483648
        %v260 = vmul.f32 %v258, 1.442695
        %v261 = vpow.pop %v260
        %v262 = vmul.f32 %v259, 1.442695
        %v263 = vpow.pop %v262
        %v264 = vadd.f32 %v261, 1.0
        %v265 = vadd.f32 %v263, 1.0
        %v266 = vrcp.pop %v264
        %v267 = vmul.f32 1.0, %v266
        %v268 = vrcp.pop %v265
        %v269 = vmul.f32 1.0, %v268
        %v270 = vld [vmem:[%s212] sm:$0x1]
        %v271 = vlaneseq
        %v272 = vshrl.u32 %v271, 7
        %v273 = vlaneseq
        %v274 = vshrl.u32 %v273, 7
        %v275 = vsub.s32 0, %v274
        %v276 = vrot.slane %v270, %v275
        %vm277 = vcmp.eq.s32.totalorder %v272, %v276
        %v278 = vsel %vm277, 1, 0
        %v279 = vcvt.s32.f32 %v278
        %v280 = vld [vmem:[#allocation2] sm:$0x3]
        %vm281 = vcmask 130048
        %v283 = vsel %vm281, %v279, 0
        %285 = vmatprep.subr.mxu0 0.0
        %286 = vmatpush1.msra.mxu0 %v267
        %287 = vmatprep.subr.mxu0 0.0
        %288 = vmatpush1.msra.mxu0 %v269
        %289 = vmatprep.subr.mxu0 0.0
        %290 = vmatpush1.msra.mxu0 0.0
        %291 = vmatprep.subr.mxu0 0.0
        %292 = vmatpush1.msra.mxu0 0.0
        %293 = vmatprep.subr.mxu0 0.0
        %294 = vmatpush1.msra.mxu0 0.0
        %295 = vmatprep.subr.mxu0 0.0
        %296 = vmatpush1.msra.mxu0 0.0
        %297 = vmatprep.subr.mxu0 0.0
        %298 = vmatpush1.msra.mxu0 0.0
        %299 = vmatprep.subr.mxu0 0.0
        %300 = vmatpush1.msra.mxu0 0.0
        %301 = vmatprep.subr.mxu0 0.0
        %302 = vmatpush1.msra.mxu0 0.0
        %303 = vmatprep.subr.mxu0 0.0
        %304 = vmatpush1.msra.mxu0 0.0
        %305 = vmatprep.subr.mxu0 0.0
        %306 = vmatpush1.msra.mxu0 0.0
        %307 = vmatprep.subr.mxu0 0.0
        %308 = vmatpush1.msra.mxu0 0.0
        %309 = vmatprep.subr.mxu0 0.0
        %310 = vmatpush1.msra.mxu0 0.0
        %311 = vmatprep.subr.mxu0 0.0
        %312 = vmatpush1.msra.mxu0 0.0
        %313 = vmatprep.subr.mxu0 0.0
        %314 = vmatpush1.msra.mxu0 0.0
        %315 = vmatprep.subr.mxu0 0.0
        %316 = vmatpush1.msra.mxu0 0.0
        %317 = vmatprep.subr.mxu0 0.0
        %318 = vmatpush1.msra.mxu0 0.0
        %319 = vmatprep.subr.mxu0 0.0
        %320 = vmatpush1.msra.mxu0 0.0
        %321 = vmatprep.subr.mxu0 0.0
        %322 = vmatpush1.msra.mxu0 0.0
        %323 = vmatprep.subr.mxu0 0.0
        %324 = vmatpush1.msra.mxu0 0.0
        %325 = vmatprep.subr.mxu0 0.0
        %326 = vmatpush1.msra.mxu0 0.0
        %327 = vmatprep.subr.mxu0 0.0
        %328 = vmatpush1.msra.mxu0 0.0
        %329 = vmatprep.subr.mxu0 0.0
        %330 = vmatpush1.msra.mxu0 0.0
        %331 = vmatprep.subr.mxu0 0.0
        %332 = vmatpush1.msra.mxu0 0.0
        %333 = vmatprep.subr.mxu0 0.0
        %334 = vmatpush1.msra.mxu0 0.0
        %335 = vmatprep.subr.mxu0 0.0
        %336 = vmatpush1.msra.mxu0 0.0
        %337 = vmatprep.subr.mxu0 0.0
        %338 = vmatpush1.msra.mxu0 0.0
        %339 = vmatprep.subr.mxu0 0.0
        %340 = vmatpush1.msra.mxu0 0.0
        %341 = vmatprep.subr.mxu0 0.0
        %342 = vmatpush1.msra.mxu0 0.0
        %343 = vmatprep.subr.mxu0 0.0
        %344 = vmatpush1.msra.mxu0 0.0
        %345 = vmatprep.subr.mxu0 0.0
        %346 = vmatpush1.msra.mxu0 0.0
        %347 = vmatprep.subr.mxu0 0.0
        %348 = vmatpush1.msra.mxu0 0.0
        %349 = vmatprep.mubr.f32.mxu0 0.0
        %350 = vmatmul.mubr.f32.gmra.mrb[0].mxu0 %v283
        %v351 = vpop.f32.mrb[0].mxu0
        %v352 = vadd.f32 0.0, %v351
        %v353 = vpop.f32.mrb[0].mxu0
        %354 = vdwg.mxu0
        %v355 = vadd.f32 %v280, %v352
        %356 = vst [vmem:[#allocation2] sm:$0x3] %v355
        // Predicated region
        $region41: #{tpu_custom_call.1} parent=31 // pred_check
          %p357 = pneg %p213
        $region42: #{tpu_custom_call.1} parent=31 // pred_check_branch
          %359 = sbr.rel (%p357) target = $region44
        $region43: #{tpu_custom_call.1} parent=31 // pred_region
          %v360 = vld [vmem:[#allocation2] sm:$0x3]
          %361 = vst [vmem:[%s205] sm:$0x3] %v360
        $region44: #{tpu_custom_call.1} parent=31 // pred_fallthru
          _
        %s362 = sand.u32 %s116, 1
        %s363 = scalar_lea.sflag [#allocation5], %s362
        %s364 = sand.u32 %s116, 1
        %s365 = smul.addr %s364, 2
        %s366 = scalar_lea.vmem [#allocation6], %s365
        // Predicated region
        $region45: #{tpu_custom_call.1} parent=31 // pred_check
          %p367 = pneg %p126
        $region46: #{tpu_custom_call.1} parent=31 // pred_check_branch
          %369 = sbr.rel (%p367) target = $region48
        $region47: #{tpu_custom_call.1} parent=31 // pred_region
          %s371 = ssub.s32 32, 32
          %372 = vsyncadd %s363, %s371
          %s373 = smul.addr %s22, 32
          %s374 = scalar_lea.hbm %s3, %s373
          %s376 = sshll.u32 %s366, 4
          %s377 = int_to_ptr.vmem [resolvable:$true] %s376
          %379 = dma.vmem_to_hbm [thread:$0]  %s377, 32, %s374, %s363
        $region48: #{tpu_custom_call.1} parent=31 // pred_fallthru
          _
      $region32: #{tpu_custom_call.1} parent=5 // pred_fallthru
        _
      %p380 = scmp.le.s32.totalorder 2, %s13
      // Predicated region
      $region49: #{tpu_custom_call.1} parent=5 // pred_check
        %p381 = pneg %p380
      $region50: #{tpu_custom_call.1} parent=5 // pred_check_branch
        %383 = sbr.rel (%p381) target = $region52
      $region51: #{tpu_custom_call.1} parent=5 // pred_region
        %s384 = ssub.s32 %s13, 2
        // Predicated region
        $region53: #{tpu_custom_call.1} parent=51 // pred_check
          %p385 = pneg %p132
        $region54: #{tpu_custom_call.1} parent=51 // pred_check_branch
          %387 = sbr.rel (%p385) target = $region56
        $region55: #{tpu_custom_call.1} parent=51 // pred_region
          %s388 = sand.u32 %s117, 1
          %s389 = scalar_lea.sflag [#allocation5], %s388
          %s390 = sand.u32 %s117, 1
          %s391 = smul.addr %s390, 2
          %s392 = scalar_lea.vmem [#allocation6], %s391
          %393 = dma.done %s389, 32
        $region56: #{tpu_custom_call.1} parent=51 // pred_fallthru
          _
      $region52: #{tpu_custom_call.1} parent=5 // pred_fallthru
        _
    $region6: #{tpu_custom_call.1} parent=1 // loop_footer
      %s17 = sadd.s32 1, %s13
    $region7: #{tpu_custom_call.1} parent=1 // loop_footer_branch
      %12 = sbr.rel target = $region3
    $region8: #{tpu_custom_call.1} parent=1 // loop_exit
      _
    %394 = vsyncpa [#allocation4], 1
    %s395 = scalar_lea.sflag [#allocation4], 1
    %396 = vsyncpa %s395, 1
    %397 = vsyncpa [#allocation5], 1
    %s398 = scalar_lea.sflag [#allocation5], 1
    %399 = vsyncpa %s398, 1

</llo_original>
